<compile_context>
chip_gen: v7x
topology: tpu7x:2x2x1
jax: 0.10.0
libtpu: 0.0.40
codegen_flags: <defaults>
</compile_context>

<pallas_src>
import functools

import jax
import jax.numpy as jnp
from jax.experimental import pallas as pl
from jax.experimental.pallas import tpu as pltpu

EPS = 1e-5          # BatchNorm2d default
TILE_M_MAX = 512    # rows (spatial positions) per grid step


def _round_up(x, m):
    return (x + m - 1) // m * m


# ---------------------------------------------------------------------------
# Pass 1: conv as im2col matmul (bf16 in, f32 acc) + BN partial sums per tile.
# ---------------------------------------------------------------------------
def conv_stats_kernel(p_ref, w_ref, y_ref, sum_ref, sq_ref):
    y = jnp.dot(p_ref[...], w_ref[...], preferred_element_type=jnp.float32)
    y_ref[...] = y
    s = jnp.sum(y, axis=0, keepdims=True)           # (1, C_pad)
    sq = jnp.sum(y * y, axis=0, keepdims=True)      # (1, C_pad)
    # Partial-sum outputs use (1, 8, C_pad) blocks so trailing dims stay
    # (8, 128)-aligned; replicate along sublanes, the wrapper reads row 0.
    sum_ref[...] = jnp.broadcast_to(s[:, None, :], sum_ref.shape)
    sq_ref[...] = jnp.broadcast_to(sq[:, None, :], sq_ref.shape)


# ---------------------------------------------------------------------------
# Pass 2: apply precomputed per-channel BatchNorm scale/shift + ReLU.
# ---------------------------------------------------------------------------
def bn_relu_kernel(y_ref, scale_ref, shift_ref, o_ref):
    o_ref[...] = jnp.maximum(y_ref[...] * scale_ref[...] + shift_ref[...], 0.0)


def _im2col(x, kernel_size, stride, padding):
    """x: (N, C, H, W) -> (N*Ho*Wo, C*K*K); column order (c, kh, kw) matches
    PyTorch weight.reshape(C_out, C_in*K*K)."""
    n, c, h, w = x.shape
    k = kernel_size
    ho = (h + 2 * padding - k) // stride + 1
    wo = (w + 2 * padding - k) // stride + 1
    xp = jnp.pad(x, ((0, 0), (0, 0), (padding, padding), (padding, padding)))
    cols = []
    for kh in range(k):
        for kw in range(k):
            cols.append(
                xp[:, :, kh:kh + stride * ho:stride, kw:kw + stride * wo:stride])
    patches = jnp.stack(cols, axis=-1)               # (N, C, Ho, Wo, K*K)
    patches = patches.transpose(0, 2, 3, 1, 4)       # (N, Ho, Wo, C, K*K)
    return patches.reshape(n * ho * wo, c * k * k), ho, wo


@functools.partial(jax.jit, static_argnames=("kernel_size", "stride", "padding"))
def conv_block(x, weight, bias, gamma, beta, *, kernel_size=4, stride=2,
               padding=1):
    """ConvBlock forward. x: (N, C_in, H, W) NCHW; weight: (C_out, C_in, K, K).
    Returns (N, C_out, Ho, Wo) float32.

    The conv bias is accepted for API parity but not applied: with train-mode
    BatchNorm it is exactly cancelled by the mean subtraction.
    """
    del bias  # mathematically dead under train-mode BatchNorm
    n, c_in, h, w = x.shape
    c_out, k = weight.shape[0], kernel_size

    # TODO(synk): fuse im2col into the kernel ((kh, kw) grid axes over the
    # padded input) to remove the ~K*K/stride^2 replication of HBM reads.
    patches, ho, wo = _im2col(x.astype(jnp.bfloat16), k, stride, padding)
    m, kdim = patches.shape

    tile_m = min(TILE_M_MAX, _round_up(m, 8))
    m_pad = _round_up(m, tile_m)
    kd_pad = _round_up(kdim, 128)
    c_pad = _round_up(c_out, 128)
    num_tiles = m_pad // tile_m

    patches = jnp.pad(patches, ((0, m_pad - m), (0, kd_pad - kdim)))
    w_mat = weight.reshape(c_out, kdim).T.astype(jnp.bfloat16)
    w_mat = jnp.pad(w_mat, ((0, kd_pad - kdim), (0, c_pad - c_out)))
    gamma_p = jnp.pad(gamma.astype(jnp.float32), (0, c_pad - c_out))
    beta_p = jnp.pad(beta.astype(jnp.float32), (0, c_pad - c_out))

    cost = pl.CostEstimate(
        flops=2 * m_pad * kd_pad * c_pad,
        transcendentals=0,
        bytes_accessed=(m_pad * kd_pad * 2 + kd_pad * c_pad * 2
                        + m_pad * c_pad * 4 + 2 * num_tiles * 8 * c_pad * 4),
    )

    y_conv, psum, psq = pl.pallas_call(
        conv_stats_kernel,
        grid=(num_tiles,),
        in_specs=[
            pl.BlockSpec((tile_m, kd_pad), lambda i: (i, 0)),
            pl.BlockSpec((kd_pad, c_pad), lambda i: (0, 0)),
        ],
        out_specs=[
            pl.BlockSpec((tile_m, c_pad), lambda i: (i, 0)),
            pl.BlockSpec((1, 8, c_pad), lambda i: (i, 0, 0)),
            pl.BlockSpec((1, 8, c_pad), lambda i: (i, 0, 0)),
        ],
        out_shape=[
            jax.ShapeDtypeStruct((m_pad, c_pad), jnp.float32),
            jax.ShapeDtypeStruct((num_tiles, 8, c_pad), jnp.float32),
            jax.ShapeDtypeStruct((num_tiles, 8, c_pad), jnp.float32),
        ],
        compiler_params=pltpu.CompilerParams(
            dimension_semantics=("parallel",)),
        cost_estimate=cost,
    )(patches, w_mat)

    # Finish BatchNorm statistics over ALL real rows. Padded rows are all-zero
    # patches (zero conv output) so they contribute nothing to either sum;
    # divide by the true row count m (biased variance, like PyTorch training).
    tot = jnp.sum(psum[:, 0, :], axis=0)
    tot_sq = jnp.sum(psq[:, 0, :], axis=0)
    mean = tot / float(m)
    var = jnp.maximum(tot_sq / float(m) - mean * mean, 0.0)
    inv_std = jax.lax.rsqrt(var + EPS)
    scale = gamma_p * inv_std
    shift = beta_p - mean * scale

    out_full = pl.pallas_call(
        bn_relu_kernel,
        grid=(num_tiles,),
        in_specs=[
            pl.BlockSpec((tile_m, c_pad), lambda i: (i, 0)),
            pl.BlockSpec((1, c_pad), lambda i: (0, 0)),
            pl.BlockSpec((1, c_pad), lambda i: (0, 0)),
        ],
        out_specs=pl.BlockSpec((tile_m, c_pad), lambda i: (i, 0)),
        out_shape=jax.ShapeDtypeStruct((m_pad, c_pad), jnp.float32),
        compiler_params=pltpu.CompilerParams(
            dimension_semantics=("parallel",)),
    )(y_conv, scale.reshape(1, c_pad), shift.reshape(1, c_pad))

    out = out_full[:m, :c_out].reshape(n, ho, wo, c_out)
    return out.transpose(0, 3, 1, 2)   # back to NCHW (PyTorch convention)


def _reference(x, weight, bias, gamma, beta, stride=2, padding=1):
    """Plain-JAX reference using the same bf16-input / f32-accumulate conv."""
    y = jax.lax.conv_general_dilated(
        x.astype(jnp.bfloat16), weight.astype(jnp.bfloat16),
        window_strides=(stride, stride),
        padding=[(padding, padding), (padding, padding)],
        dimension_numbers=("NCHW", "OIHW", "NCHW"),
        preferred_element_type=jnp.float32,
    ) + bias.reshape(1, -1, 1, 1)
    mean = jnp.mean(y, axis=(0, 2, 3), keepdims=True)
    var = jnp.mean((y - mean) ** 2, axis=(0, 2, 3), keepdims=True)
    y_hat = (y - mean) * jax.lax.rsqrt(var + EPS)
    y_bn = y_hat * gamma.reshape(1, -1, 1, 1) + beta.reshape(1, -1, 1, 1)
    return jnp.maximum(y_bn, 0.0)


if __name__ == "__main__":
    key = jax.random.PRNGKey(0)
    k_x, k_w, k_b = jax.random.split(key, 3)

    N, C_IN, H, W = 2, 4, 16, 16
    C_OUT, K, STRIDE, PAD = 8, 4, 2, 1

    x = jax.random.normal(k_x, (N, C_IN, H, W), dtype=jnp.float32)
    # Deterministic synthetic parameters (mimics small uniform conv init).
    bound = 1.0 / (C_IN * K * K) ** 0.5
    weight = jax.random.uniform(k_w, (C_OUT, C_IN, K, K), jnp.float32, -bound, bound)
    bias = jax.random.uniform(k_b, (C_OUT,), jnp.float32, -bound, bound)
    gamma = jnp.ones((C_OUT,), jnp.float32)   # BatchNorm2d default weight
    beta = jnp.zeros((C_OUT,), jnp.float32)   # BatchNorm2d default bias

    out = conv_block(x, weight, bias, gamma, beta,
                     kernel_size=K, stride=STRIDE, padding=PAD)
    out = jax.block_until_ready(out)

    ref = _reference(x, weight, bias, gamma, beta, stride=STRIDE, padding=PAD)
    assert out.shape == (N, C_OUT, H // 2, W // 2), out.shape
    assert jnp.allclose(out, ref, atol=2e-3, rtol=2e-3), (
        "mismatch vs reference", float(jnp.max(jnp.abs(out - ref))))

    print("KERNEL_OK")
</pallas_src>

<mosaic_0001>
module attributes {stable_mosaic.version = 11 : i64} {
  func.func @conv_stats_kernel(%arg0: i32, %arg1: memref<128x128xbf16, #tpu.memory_space<vmem>>, %arg2: memref<128x128xbf16, #tpu.memory_space<vmem>>, %arg3: memref<128x128xf32, #tpu.memory_space<vmem>>, %arg4: memref<1x8x128xf32, #tpu.memory_space<vmem>>, %arg5: memref<1x8x128xf32, #tpu.memory_space<vmem>>) attributes {dimension_semantics = [#tpu.dimension_semantics<parallel>], iteration_bounds = array<i64: 1>, scalar_prefetch = 0 : i64, scratch_operands = 0 : i64, tpu.core_type = #tpu.core_type<tc>, window_params = [{transform_indices = @transform_0, window_bounds = array<i64: 128, 128>}, {pipeline_mode = #tpu.pipeline_mode<synchronous>, transform_indices = @transform_1, window_bounds = array<i64: 128, 128>}, {transform_indices = @transform_2, window_bounds = array<i64: 128, 128>}, {transform_indices = @transform_3, window_bounds = array<i64: 1, 8, 128>}, {transform_indices = @transform_4, window_bounds = array<i64: 1, 8, 128>}]} {
    %c0 = arith.constant 0 : index
    %c0_0 = arith.constant 0 : index
    %0 = vector.load %arg1[%c0, %c0_0] : memref<128x128xbf16, #tpu.memory_space<vmem>>, vector<128x128xbf16>
    %c0_1 = arith.constant 0 : index
    %c0_2 = arith.constant 0 : index
    %1 = vector.load %arg2[%c0_1, %c0_2] : memref<128x128xbf16, #tpu.memory_space<vmem>>, vector<128x128xbf16>
    %cst = arith.constant dense<0.000000e+00> : vector<128x128xf32>
    %2 = tpu.matmul %0, %1, %cst {dimension_numbers = #tpu.dot_dimension_numbers<[1], [0], [0], [1], [0, 0, 1, 1], [], []>} : vector<128x128xbf16>, vector<128x128xbf16>, vector<128x128xf32> -> vector<128x128xf32>
    %c0_3 = arith.constant 0 : index
    %c0_4 = arith.constant 0 : index
    %3 = vector.load %arg3[%c0_3, %c0_4] : memref<128x128xf32, #tpu.memory_space<vmem>>, vector<128x128xf32>
    tpu.vector_store %arg3[%c0_3, %c0_4], %2 {strides = array<i32>} : memref<128x128xf32, #tpu.memory_space<vmem>>, vector<128x128xf32>,
    %cst_5 = arith.constant dense<0.000000e+00> : vector<128xf32>
    %4 = vector.multi_reduction <add>, %2, %cst_5 [0] : vector<128x128xf32> to vector<128xf32>
    %5 = vector.shape_cast %4 : vector<128xf32> to vector<1x128xf32>
    %6 = arith.mulf %2, %2 : vector<128x128xf32>
    %cst_6 = arith.constant dense<0.000000e+00> : vector<128xf32>
    %7 = vector.multi_reduction <add>, %6, %cst_6 [0] : vector<128x128xf32> to vector<128xf32>
    %8 = vector.shape_cast %7 : vector<128xf32> to vector<1x128xf32>
    %9 = vector.shape_cast %5 : vector<1x128xf32> to vector<1x1x128xf32>
    %10 = vector.shape_cast %9 : vector<1x1x128xf32> to vector<1x1x128xf32>
    %11 = vector.broadcast %10 : vector<1x1x128xf32> to vector<1x8x128xf32>
    %c0_7 = arith.constant 0 : index
    %c0_8 = arith.constant 0 : index
    %c0_9 = arith.constant 0 : index
    %12 = vector.load %arg4[%c0_7, %c0_8, %c0_9] : memref<1x8x128xf32, #tpu.memory_space<vmem>>, vector<1x8x128xf32>
    tpu.vector_store %arg4[%c0_7, %c0_8, %c0_9], %11 {strides = array<i32>} : memref<1x8x128xf32, #tpu.memory_space<vmem>>, vector<1x8x128xf32>,
    %13 = vector.shape_cast %8 : vector<1x128xf32> to vector<1x1x128xf32>
    %14 = vector.shape_cast %13 : vector<1x1x128xf32> to vector<1x1x128xf32>
    %15 = vector.broadcast %14 : vector<1x1x128xf32> to vector<1x8x128xf32>
    %c0_10 = arith.constant 0 : index
    %c0_11 = arith.constant 0 : index
    %c0_12 = arith.constant 0 : index
    %16 = vector.load %arg5[%c0_10, %c0_11, %c0_12] : memref<1x8x128xf32, #tpu.memory_space<vmem>>, vector<1x8x128xf32>
    tpu.vector_store %arg5[%c0_10, %c0_11, %c0_12], %15 {strides = array<i32>} : memref<1x8x128xf32, #tpu.memory_space<vmem>>, vector<1x8x128xf32>,
    return
  }
  func.func @transform_0(%arg0: i32) -> (i32, i32) {
    %c0_i32 = arith.constant 0 : i32
    %c0_i32_0 = arith.constant 0 : i32
    return %arg0, %c0_i32 : i32, i32
  }
  func.func @transform_1(%arg0: i32) -> (i32, i32) {
    %c0_i32 = arith.constant 0 : i32
    %c0_i32_0 = arith.constant 0 : i32
    %c0_i32_1 = arith.constant 0 : i32
    return %c0_i32, %c0_i32_0 : i32, i32
  }
  func.func @transform_2(%arg0: i32) -> (i32, i32) {
    %c0_i32 = arith.constant 0 : i32
    %c0_i32_0 = arith.constant 0 : i32
    return %arg0, %c0_i32 : i32, i32
  }
  func.func @transform_3(%arg0: i32) -> (i32, i32, i32) {
    %c0_i32 = arith.constant 0 : i32
    %c0_i32_0 = arith.constant 0 : i32
    %c0_i32_1 = arith.constant 0 : i32
    return %arg0, %c0_i32, %c0_i32_0 : i32, i32, i32
  }
  func.func @transform_4(%arg0: i32) -> (i32, i32, i32) {
    %c0_i32 = arith.constant 0 : i32
    %c0_i32_0 = arith.constant 0 : i32
    %c0_i32_1 = arith.constant 0 : i32
    return %arg0, %c0_i32, %c0_i32_0 : i32, i32, i32
  }
}

module attributes {stable_mosaic.version = 11 : i64} {
  func.func @bn_relu_kernel(%arg0: i32, %arg1: memref<128x128xf32, #tpu.memory_space<vmem>>, %arg2: memref<1x128xf32, #tpu.memory_space<vmem>>, %arg3: memref<1x128xf32, #tpu.memory_space<vmem>>, %arg4: memref<128x128xf32, #tpu.memory_space<vmem>>) attributes {dimension_semantics = [#tpu.dimension_semantics<parallel>], iteration_bounds = array<i64: 1>, scalar_prefetch = 0 : i64, scratch_operands = 0 : i64, tpu.core_type = #tpu.core_type<tc>, window_params = [{transform_indices = @transform_0, window_bounds = array<i64: 128, 128>}, {pipeline_mode = #tpu.pipeline_mode<synchronous>, transform_indices = @transform_1, window_bounds = array<i64: 1, 128>}, {pipeline_mode = #tpu.pipeline_mode<synchronous>, transform_indices = @transform_2, window_bounds = array<i64: 1, 128>}, {transform_indices = @transform_3, window_bounds = array<i64: 128, 128>}]} {
    %c0 = arith.constant 0 : index
    %c0_0 = arith.constant 0 : index
    %0 = vector.load %arg1[%c0, %c0_0] : memref<128x128xf32, #tpu.memory_space<vmem>>, vector<128x128xf32>
    %c0_1 = arith.constant 0 : index
    %c0_2 = arith.constant 0 : index
    %1 = vector.load %arg2[%c0_1, %c0_2] : memref<1x128xf32, #tpu.memory_space<vmem>>, vector<1x128xf32>
    %2 = vector.broadcast %1 : vector<1x128xf32> to vector<128x128xf32>
    %3 = arith.mulf %0, %2 : vector<128x128xf32>
    %c0_3 = arith.constant 0 : index
    %c0_4 = arith.constant 0 : index
    %4 = vector.load %arg3[%c0_3, %c0_4] : memref<1x128xf32, #tpu.memory_space<vmem>>, vector<1x128xf32>
    %5 = vector.broadcast %4 : vector<1x128xf32> to vector<128x128xf32>
    %6 = arith.addf %3, %5 : vector<128x128xf32>
    %cst = arith.constant 0.000000e+00 : f32
    %7 = vector.broadcast %cst : f32 to vector<128x128xf32>
    %8 = arith.maximumf %6, %7 : vector<128x128xf32>
    %c0_5 = arith.constant 0 : index
    %c0_6 = arith.constant 0 : index
    %9 = vector.load %arg4[%c0_5, %c0_6] : memref<128x128xf32, #tpu.memory_space<vmem>>, vector<128x128xf32>
    tpu.vector_store %arg4[%c0_5, %c0_6], %8 {strides = array<i32>} : memref<128x128xf32, #tpu.memory_space<vmem>>, vector<128x128xf32>,
    return
  }
  func.func @transform_0(%arg0: i32) -> (i32, i32) {
    %c0_i32 = arith.constant 0 : i32
    %c0_i32_0 = arith.constant 0 : i32
    return %arg0, %c0_i32 : i32, i32
  }
  func.func @transform_1(%arg0: i32) -> (i32, i32) {
    %c0_i32 = arith.constant 0 : i32
    %c0_i32_0 = arith.constant 0 : i32
    %c0_i32_1 = arith.constant 0 : i32
    return %c0_i32, %c0_i32_0 : i32, i32
  }
  func.func @transform_2(%arg0: i32) -> (i32, i32) {
    %c0_i32 = arith.constant 0 : i32
    %c0_i32_0 = arith.constant 0 : i32
    %c0_i32_1 = arith.constant 0 : i32
    return %c0_i32, %c0_i32_0 : i32, i32
  }
  func.func @transform_3(%arg0: i32) -> (i32, i32) {
    %c0_i32 = arith.constant 0 : i32
    %c0_i32_0 = arith.constant 0 : i32
    return %arg0, %c0_i32 : i32, i32
  }
}

</mosaic_0001>

<llo_original>
// kernel: conv_block.3
$region0: #{conv_block.3}
  #allocation0 [shape = 'u32[]', space=smem, size = 0x4, offset = 0x4, fixed_abs, tag = 'smem constant byte address 0x4 - core index']
  #allocation1 [shape = 'u32[144,128]{1,0:T(1,128)}', space=vmem, size = 0x12000, scoped, tag = 'internal scratch']
  %s0 = inlined_call_operand.vmem [shape: f32[128,128], index: 0, kind: input, shape index: {}]
  %s1 = inlined_call_operand.vmem [shape: f32[1,128], index: 1, kind: input, shape index: {}]
  %s2 = inlined_call_operand.vmem [shape: f32[1,128], index: 2, kind: input, shape index: {}]
  %s3 = inlined_call_operand.vmem [shape: f32[128,128], index: 3, kind: output, shape index: {}]
  %s4 = sld [smem:[#allocation0]]
  $region22: #{conv_block.3} parent=0
    _
  %s6 = ssub.s32 1, %s4
  %s7 = scalar_select 0, %s6, %s4
  // Predicated region
  $region2: #{conv_block.3} parent=0 // pred_check
    _
  $region3: #{conv_block.3} parent=0 // pred_check_branch
    %9 = sbr.rel (0) target = $region5
  $region4: #{conv_block.3} parent=0 // pred_region
    _
  $region5: #{conv_block.3} parent=0 // pred_fallthru
    _
  // Predicated region
  $region6: #{conv_block.3} parent=0 // pred_check
    _
  $region7: #{conv_block.3} parent=0 // pred_check_branch
    %11 = sbr.rel (0) target = $region9
  $region8: #{conv_block.3} parent=0 // pred_region
    _
  $region9: #{conv_block.3} parent=0 // pred_fallthru
    _
  // Predicated region
  $region10: #{conv_block.3} parent=0 // pred_check
    _
  $region11: #{conv_block.3} parent=0 // pred_check_branch
    %13 = sbr.rel (0) target = $region13
  $region12: #{conv_block.3} parent=0 // pred_region
    _
  $region13: #{conv_block.3} parent=0 // pred_fallthru
    _
  %v14 = vld [vmem:[%s0] sm:$0xff]
  %v15 = vld [vmem:[%s0 + $0x8] sm:$0xff]
  %v16 = vld [vmem:[%s0 + $0x10] sm:$0xff]
  %v17 = vld [vmem:[%s0 + $0x18] sm:$0xff]
  %v18 = vld [vmem:[%s0 + $0x20] sm:$0xff]
  %v19 = vld [vmem:[%s0 + $0x28] sm:$0xff]
  %v20 = vld [vmem:[%s0 + $0x30] sm:$0xff]
  %v21 = vld [vmem:[%s0 + $0x38] sm:$0xff]
  %v22 = vld [vmem:[%s0 + $0x40] sm:$0xff]
  %v23 = vld [vmem:[%s0 + $0x48] sm:$0xff]
  %v24 = vld [vmem:[%s0 + $0x50] sm:$0xff]
  %v25 = vld [vmem:[%s0 + $0x58] sm:$0xff]
  %v26 = vld [vmem:[%s0 + $0x60] sm:$0xff]
  %v27 = vld [vmem:[%s0 + $0x68] sm:$0xff]
  %v28 = vld [vmem:[%s0 + $0x70] sm:$0xff]
  %v29 = vld [vmem:[%s0 + $0x78] sm:$0xff]
  %v30 = vld [vmem:[%s1] sm:$0x1]
  %v32 = vlaneseq
  %v33 = vshrl.u32 %v32, 7
  %v34 = vsub.s32 0, %v33
  %v35 = vrot.slane %v30, %v34
  %v37 = vmul.f32 %v14, %v35
  %v38 = vmul.f32 %v15, %v35
  %v39 = vmul.f32 %v16, %v35
  %v40 = vmul.f32 %v17, %v35
  %v41 = vmul.f32 %v18, %v35
  %v42 = vmul.f32 %v19, %v35
  %v43 = vmul.f32 %v20, %v35
  %v44 = vmul.f32 %v21, %v35
  %v45 = vmul.f32 %v22, %v35
  %v46 = vmul.f32 %v23, %v35
  %v47 = vmul.f32 %v24, %v35
  %v48 = vmul.f32 %v25, %v35
  %v49 = vmul.f32 %v26, %v35
  %v50 = vmul.f32 %v27, %v35
  %v51 = vmul.f32 %v28, %v35
  %v52 = vmul.f32 %v29, %v35
  %v53 = vld [vmem:[%s2] sm:$0x1]
  %v55 = vlaneseq
  %v56 = vshrl.u32 %v55, 7
  %v57 = vsub.s32 0, %v56
  %v58 = vrot.slane %v53, %v57
  %v60 = vadd.f32 %v37, %v58
  %v61 = vadd.f32 %v38, %v58
  %v62 = vadd.f32 %v39, %v58
  %v63 = vadd.f32 %v40, %v58
  %v64 = vadd.f32 %v41, %v58
  %v65 = vadd.f32 %v42, %v58
  %v66 = vadd.f32 %v43, %v58
  %v67 = vadd.f32 %v44, %v58
  %v68 = vadd.f32 %v45, %v58
  %v69 = vadd.f32 %v46, %v58
  %v70 = vadd.f32 %v47, %v58
  %v71 = vadd.f32 %v48, %v58
  %v72 = vadd.f32 %v49, %v58
  %v73 = vadd.f32 %v50, %v58
  %v74 = vadd.f32 %v51, %v58
  %v75 = vadd.f32 %v52, %v58
  %v76 = vmax.f32 %v60, 0.0
  %v77 = vmax.f32 %v61, 0.0
  %v78 = vmax.f32 %v62, 0.0
  %v79 = vmax.f32 %v63, 0.0
  %v80 = vmax.f32 %v64, 0.0
  %v81 = vmax.f32 %v65, 0.0
  %v82 = vmax.f32 %v66, 0.0
  %v83 = vmax.f32 %v67, 0.0
  %v84 = vmax.f32 %v68, 0.0
  %v85 = vmax.f32 %v69, 0.0
  %v86 = vmax.f32 %v70, 0.0
  %v87 = vmax.f32 %v71, 0.0
  %v88 = vmax.f32 %v72, 0.0
  %v89 = vmax.f32 %v73, 0.0
  %v90 = vmax.f32 %v74, 0.0
  %v91 = vmax.f32 %v75, 0.0
  %92 = vst [vmem:[%s3] sm:$0xff] %v76
  %93 = vst [vmem:[%s3 + $0x8] sm:$0xff] %v77
  %94 = vst [vmem:[%s3 + $0x10] sm:$0xff] %v78
  %95 = vst [vmem:[%s3 + $0x18] sm:$0xff] %v79
  %96 = vst [vmem:[%s3 + $0x20] sm:$0xff] %v80
  %97 = vst [vmem:[%s3 + $0x28] sm:$0xff] %v81
  %98 = vst [vmem:[%s3 + $0x30] sm:$0xff] %v82
  %99 = vst [vmem:[%s3 + $0x38] sm:$0xff] %v83
  %100 = vst [vmem:[%s3 + $0x40] sm:$0xff] %v84
  %101 = vst [vmem:[%s3 + $0x48] sm:$0xff] %v85
  %102 = vst [vmem:[%s3 + $0x50] sm:$0xff] %v86
  %103 = vst [vmem:[%s3 + $0x58] sm:$0xff] %v87
  %104 = vst [vmem:[%s3 + $0x60] sm:$0xff] %v88
  %105 = vst [vmem:[%s3 + $0x68] sm:$0xff] %v89
  %106 = vst [vmem:[%s3 + $0x70] sm:$0xff] %v90
  %107 = vst [vmem:[%s3 + $0x78] sm:$0xff] %v91
  // Predicated region
  $region14: #{conv_block.3} parent=0 // pred_check
    _
  $region15: #{conv_block.3} parent=0 // pred_check_branch
    %109 = sbr.rel (0) target = $region17
  $region16: #{conv_block.3} parent=0 // pred_region
    _
  $region17: #{conv_block.3} parent=0 // pred_fallthru
    _
  // Predicated region
  $region18: #{conv_block.3} parent=0 // pred_check
    _
  $region19: #{conv_block.3} parent=0 // pred_check_branch
    %111 = sbr.rel (0) target = $region21
  $region20: #{conv_block.3} parent=0 // pred_region
    _
  $region21: #{conv_block.3} parent=0 // pred_fallthru
    _

// kernel: conv_block.2
$region0: #{conv_block.2}
  #allocation0 [shape = 'u32[]', space=smem, size = 0x4, offset = 0x4, fixed_abs, tag = 'smem constant byte address 0x4 - core index']
  #allocation1 [shape = 'u32[144,128]{1,0:T(1,128)}', space=vmem, size = 0x12000, scoped, tag = 'internal scratch']
  %s0 = inlined_call_operand.vmem [shape: bf16[128,128], index: 0, kind: input, shape index: {}]
  %s1 = inlined_call_operand.vmem [shape: bf16[128,128], index: 1, kind: input, shape index: {}]
  %s2 = inlined_call_operand.vmem [shape: f32[128,128], index: 2, kind: output, shape index: {0}]
  %s3 = inlined_call_operand.vmem [shape: f32[1,8,128], index: 3, kind: output, shape index: {1}]
  %s4 = inlined_call_operand.vmem [shape: f32[1,8,128], index: 4, kind: output, shape index: {2}]
  %5 = xla_tuple %s2, %s3, %s4
  %s6 = sld [smem:[#allocation0]]
  $region34: #{conv_block.2} parent=0
    _
  %s8 = ssub.s32 1, %s6
  %s9 = scalar_select 0, %s8, %s6
  // Predicated region
  $region2: #{conv_block.2} parent=0 // pred_check
    _
  $region3: #{conv_block.2} parent=0 // pred_check_branch
    %11 = sbr.rel (0) target = $region5
  $region4: #{conv_block.2} parent=0 // pred_region
    _
  $region5: #{conv_block.2} parent=0 // pred_fallthru
    _
  // Predicated region
  $region6: #{conv_block.2} parent=0 // pred_check
    _
  $region7: #{conv_block.2} parent=0 // pred_check_branch
    %13 = sbr.rel (0) target = $region9
  $region8: #{conv_block.2} parent=0 // pred_region
    _
  $region9: #{conv_block.2} parent=0 // pred_fallthru
    _
  %v15 = vld [vmem:[%s0] sm:$0xf]
  %v16 = vld [vmem:[%s0 + $0x4] sm:$0xf]
  %v17 = vld [vmem:[%s0 + $0x8] sm:$0xf]
  %v18 = vld [vmem:[%s0 + $0xc] sm:$0xf]
  %v19 = vld [vmem:[%s0 + $0x10] sm:$0xf]
  %v20 = vld [vmem:[%s0 + $0x14] sm:$0xf]
  %v21 = vld [vmem:[%s0 + $0x18] sm:$0xf]
  %v22 = vld [vmem:[%s0 + $0x1c] sm:$0xf]
  %v23 = vld [vmem:[%s0 + $0x20] sm:$0xf]
  %v24 = vld [vmem:[%s0 + $0x24] sm:$0xf]
  %v25 = vld [vmem:[%s0 + $0x28] sm:$0xf]
  %v26 = vld [vmem:[%s0 + $0x2c] sm:$0xf]
  %v27 = vld [vmem:[%s0 + $0x30] sm:$0xf]
  %v28 = vld [vmem:[%s0 + $0x34] sm:$0xf]
  %v29 = vld [vmem:[%s0 + $0x38] sm:$0xf]
  %v30 = vld [vmem:[%s0 + $0x3c] sm:$0xf]
  %v31 = vld [vmem:[%s1] sm:$0xf]
  %v32 = vld [vmem:[%s1 + $0x4] sm:$0xf]
  %v33 = vld [vmem:[%s1 + $0x8] sm:$0xf]
  %v34 = vld [vmem:[%s1 + $0xc] sm:$0xf]
  %v35 = vld [vmem:[%s1 + $0x10] sm:$0xf]
  %v36 = vld [vmem:[%s1 + $0x14] sm:$0xf]
  %v37 = vld [vmem:[%s1 + $0x18] sm:$0xf]
  %v38 = vld [vmem:[%s1 + $0x1c] sm:$0xf]
  %v39 = vld [vmem:[%s1 + $0x20] sm:$0xf]
  %v40 = vld [vmem:[%s1 + $0x24] sm:$0xf]
  %v41 = vld [vmem:[%s1 + $0x28] sm:$0xf]
  %v42 = vld [vmem:[%s1 + $0x2c] sm:$0xf]
  %v43 = vld [vmem:[%s1 + $0x30] sm:$0xf]
  %v44 = vld [vmem:[%s1 + $0x34] sm:$0xf]
  %v45 = vld [vmem:[%s1 + $0x38] sm:$0xf]
  %v46 = vld [vmem:[%s1 + $0x3c] sm:$0xf]
  %v63 = vunpack.c.l.b16 %v15
  %v64 = vunpack.c.l.b16 %v16
  %v65 = vunpack.c.l.b16 %v17
  %v66 = vunpack.c.l.b16 %v18
  %v67 = vunpack.c.l.b16 %v19
  %v68 = vunpack.c.l.b16 %v20
  %v69 = vunpack.c.l.b16 %v21
  %v70 = vunpack.c.l.b16 %v22
  %v71 = vunpack.c.l.b16 %v23
  %v72 = vunpack.c.l.b16 %v24
  %v73 = vunpack.c.l.b16 %v25
  %v74 = vunpack.c.l.b16 %v26
  %v75 = vunpack.c.l.b16 %v27
  %v76 = vunpack.c.l.b16 %v28
  %v77 = vunpack.c.l.b16 %v29
  %v78 = vunpack.c.l.b16 %v30
  %v79 = vpack.c.b16 %v64, %v63
  %v80 = vpack.c.b16 %v66, %v65
  %v81 = vpack.c.b16 %v68, %v67
  %v82 = vpack.c.b16 %v70, %v69
  %v83 = vpack.c.b16 %v72, %v71
  %v84 = vpack.c.b16 %v74, %v73
  %v85 = vpack.c.b16 %v76, %v75
  %v86 = vpack.c.b16 %v78, %v77
  %v111 = vunpack.c.l.b16 %v31
  %v112 = vunpack.c.l.b16 %v32
  %v113 = vunpack.c.l.b16 %v33
  %v114 = vunpack.c.l.b16 %v34
  %v115 = vunpack.c.l.b16 %v35
  %v116 = vunpack.c.l.b16 %v36
  %v117 = vunpack.c.l.b16 %v37
  %v118 = vunpack.c.l.b16 %v38
  %v119 = vunpack.c.l.b16 %v39
  %v120 = vunpack.c.l.b16 %v40
  %v121 = vunpack.c.l.b16 %v41
  %v122 = vunpack.c.l.b16 %v42
  %v123 = vunpack.c.l.b16 %v43
  %v124 = vunpack.c.l.b16 %v44
  %v125 = vunpack.c.l.b16 %v45
  %v126 = vunpack.c.l.b16 %v46
  %v127 = vpack.c.b16 %v112, %v111
  %v128 = vpack.c.b16 %v114, %v113
  %v129 = vpack.c.b16 %v116, %v115
  %v130 = vpack.c.b16 %v118, %v117
  %v131 = vpack.c.b16 %v120, %v119
  %v132 = vpack.c.b16 %v122, %v121
  %v133 = vpack.c.b16 %v124, %v123
  %v134 = vpack.c.b16 %v126, %v125
  %143 = vmatprep.subr.bf16.mxu0 0
  %144 = vmatpush1.bf16.msra.mxu0 %v127
  %145 = vmatprep.subr.bf16.mxu0 0
  %146 = vmatpush1.bf16.msra.mxu0 %v128
  %147 = vmatprep.subr.bf16.mxu0 0
  %148 = vmatpush1.bf16.msra.mxu0 %v129
  %149 = vmatprep.subr.bf16.mxu0 0
  %150 = vmatpush1.bf16.msra.mxu0 %v130
  %151 = vmatprep.subr.bf16.mxu0 0
  %152 = vmatpush1.bf16.msra.mxu0 %v131
  %153 = vmatprep.subr.bf16.mxu0 0
  %154 = vmatpush1.bf16.msra.mxu0 %v132
  %155 = vmatprep.subr.bf16.mxu0 0
  %156 = vmatpush1.bf16.msra.mxu0 %v133
  %157 = vmatprep.subr.bf16.mxu0 0
  %158 = vmatpush1.bf16.msra.mxu0 %v134
  %159 = vmatprep.subr.bf16.mxu0 0
  %160 = vmatpush1.bf16.msra.mxu0 0
  %161 = vmatprep.subr.bf16.mxu0 0
  %162 = vmatpush1.bf16.msra.mxu0 0
  %163 = vmatprep.subr.bf16.mxu0 0
  %164 = vmatpush1.bf16.msra.mxu0 0
  %165 = vmatprep.subr.bf16.mxu0 0
  %166 = vmatpush1.bf16.msra.mxu0 0
  %167 = vmatprep.subr.bf16.mxu0 0
  %168 = vmatpush1.bf16.msra.mxu0 0
  %169 = vmatprep.subr.bf16.mxu0 0
  %170 = vmatpush1.bf16.msra.mxu0 0
  %171 = vmatprep.subr.bf16.mxu0 0
  %172 = vmatpush1.bf16.msra.mxu0 0
  %173 = vmatprep.subr.bf16.mxu0 0
  %174 = vmatpush1.bf16.msra.mxu0 0
  %175 = vmatprep.mubr.bf16.mxu0 0
  %176 = vmatmul.mubr.bf16.gmra.mrb[0].mxu0 %v79
  %v177 = vpop.f32.mrb[0].mxu0
  %v178 = vadd.f32 0.0, %v177
  %v179 = vpop.f32.mrb[0].mxu0
  %v180 = vpop.f32.mrb[0].mxu0
  %v181 = vadd.f32 0.0, %v180
  %v182 = vpop.f32.mrb[0].mxu0
  %183 = vmatprep.mubr.bf16.mxu0 0
  %184 = vmatmul.mubr.bf16.gmra.mrb[0].mxu0 %v80
  %v185 = vpop.f32.mrb[0].mxu0
  %v186 = vadd.f32 0.0, %v185
  %v187 = vpop.f32.mrb[0].mxu0
  %v188 = vpop.f32.mrb[0].mxu0
  %v189 = vadd.f32 0.0, %v188
  %v190 = vpop.f32.mrb[0].mxu0
  %191 = vmatprep.mubr.bf16.mxu0 0
  %192 = vmatmul.mubr.bf16.gmra.mrb[0].mxu0 %v81
  %v193 = vpop.f32.mrb[0].mxu0
  %v194 = vadd.f32 0.0, %v193
  %v195 = vpop.f32.mrb[0].mxu0
  %v196 = vpop.f32.mrb[0].mxu0
  %v197 = vadd.f32 0.0, %v196
  %v198 = vpop.f32.mrb[0].mxu0
  %199 = vmatprep.mubr.bf16.mxu0 0
  %200 = vmatmul.mubr.bf16.gmra.mrb[0].mxu0 %v82
  %v201 = vpop.f32.mrb[0].mxu0
  %v202 = vadd.f32 0.0, %v201
  %v203 = vpop.f32.mrb[0].mxu0
  %v204 = vpop.f32.mrb[0].mxu0
  %v205 = vadd.f32 0.0, %v204
  %v206 = vpop.f32.mrb[0].mxu0
  %207 = vmatprep.mubr.bf16.mxu0 0
  %208 = vmatmul.mubr.bf16.gmra.mrb[0].mxu0 %v83
  %v209 = vpop.f32.mrb[0].mxu0
  %v210 = vadd.f32 0.0, %v209
  %v211 = vpop.f32.mrb[0].mxu0
  %v212 = vpop.f32.mrb[0].mxu0
  %v213 = vadd.f32 0.0, %v212
  %v214 = vpop.f32.mrb[0].mxu0
  %215 = vmatprep.mubr.bf16.mxu0 0
  %216 = vmatmul.mubr.bf16.gmra.mrb[0].mxu0 %v84
  %v217 = vpop.f32.mrb[0].mxu0
  %v218 = vadd.f32 0.0, %v217
  %v219 = vpop.f32.mrb[0].mxu0
  %v220 = vpop.f32.mrb[0].mxu0
  %v221 = vadd.f32 0.0, %v220
  %v222 = vpop.f32.mrb[0].mxu0
  %223 = vmatprep.mubr.bf16.mxu0 0
  %224 = vmatmul.mubr.bf16.gmra.mrb[0].mxu0 %v85
  %v225 = vpop.f32.mrb[0].mxu0
  %v226 = vadd.f32 0.0, %v225
  %v227 = vpop.f32.mrb[0].mxu0
  %v228 = vpop.f32.mrb[0].mxu0
  %v229 = vadd.f32 0.0, %v228
  %v230 = vpop.f32.mrb[0].mxu0
  %231 = vmatprep.mubr.bf16.mxu0 0
  %232 = vmatmul.mubr.bf16.gmra.mrb[0].mxu0 %v86
  %v233 = vpop.f32.mrb[0].mxu0
  %v234 = vadd.f32 0.0, %v233
  %v235 = vpop.f32.mrb[0].mxu0
  %v236 = vpop.f32.mrb[0].mxu0
  %v237 = vadd.f32 0.0, %v236
  %v238 = vpop.f32.mrb[0].mxu0
  %239 = vdwg.mxu0
  %240 = vst [vmem:[%s2] sm:$0xff] %v178
  %241 = vst [vmem:[%s2 + $0x8] sm:$0xff] %v181
  %242 = vst [vmem:[%s2 + $0x10] sm:$0xff] %v186
  %243 = vst [vmem:[%s2 + $0x18] sm:$0xff] %v189
  %244 = vst [vmem:[%s2 + $0x20] sm:$0xff] %v194
  %245 = vst [vmem:[%s2 + $0x28] sm:$0xff] %v197
  %246 = vst [vmem:[%s2 + $0x30] sm:$0xff] %v202
  %247 = vst [vmem:[%s2 + $0x38] sm:$0xff] %v205
  %248 = vst [vmem:[%s2 + $0x40] sm:$0xff] %v210
  %249 = vst [vmem:[%s2 + $0x48] sm:$0xff] %v213
  %250 = vst [vmem:[%s2 + $0x50] sm:$0xff] %v218
  %251 = vst [vmem:[%s2 + $0x58] sm:$0xff] %v221
  %252 = vst [vmem:[%s2 + $0x60] sm:$0xff] %v226
  %253 = vst [vmem:[%s2 + $0x68] sm:$0xff] %v229
  %254 = vst [vmem:[%s2 + $0x70] sm:$0xff] %v234
  %255 = vst [vmem:[%s2 + $0x78] sm:$0xff] %v237
  %v256 = vadd.f32 %v178, %v181
  %v257 = vadd.f32 %v256, %v186
  %v258 = vadd.f32 %v257, %v189
  %v259 = vadd.f32 %v258, %v194
  %v260 = vadd.f32 %v259, %v197
  %v261 = vadd.f32 %v260, %v202
  %v262 = vadd.f32 %v261, %v205
  %v263 = vadd.f32 %v262, %v210
  %v264 = vadd.f32 %v263, %v213
  %v265 = vadd.f32 %v264, %v218
  %v266 = vadd.f32 %v265, %v221
  %v267 = vadd.f32 %v266, %v226
  %v268 = vadd.f32 %v267, %v229
  %v269 = vadd.f32 %v268, %v234
  %v270 = vadd.f32 %v269, %v237
  %v271 = vrot.slane %v270, 4
  %v272 = vadd.f32 %v270, %v271
  %v273 = vrot.slane %v272, 2
  %v274 = vadd.f32 %v272, %v273
  %v275 = vrot.slane %v274, 1
  %v276 = vadd.f32 %v274, %v275
  %v277 = vmul.f32 %v178, %v178
  %v278 = vmul.f32 %v181, %v181
  %v279 = vmul.f32 %v186, %v186
  %v280 = vmul.f32 %v189, %v189
  %v281 = vmul.f32 %v194, %v194
  %v282 = vmul.f32 %v197, %v197
  %v283 = vmul.f32 %v202, %v202
  %v284 = vmul.f32 %v205, %v205
  %v285 = vmul.f32 %v210, %v210
  %v286 = vmul.f32 %v213, %v213
  %v287 = vmul.f32 %v218, %v218
  %v288 = vmul.f32 %v221, %v221
  %v289 = vmul.f32 %v226, %v226
  %v290 = vmul.f32 %v229, %v229
  %v291 = vmul.f32 %v234, %v234
  %v292 = vmul.f32 %v237, %v237
  %v293 = vadd.f32 %v277, %v278
  %v294 = vadd.f32 %v293, %v279
  %v295 = vadd.f32 %v294, %v280
  %v296 = vadd.f32 %v295, %v281
  %v297 = vadd.f32 %v296, %v282
  %v298 = vadd.f32 %v297, %v283
  %v299 = vadd.f32 %v298, %v284
  %v300 = vadd.f32 %v299, %v285
  %v301 = vadd.f32 %v300, %v286
  %v302 = vadd.f32 %v301, %v287
  %v303 = vadd.f32 %v302, %v288
  %v304 = vadd.f32 %v303, %v289
  %v305 = vadd.f32 %v304, %v290
  %v306 = vadd.f32 %v305, %v291
  %v307 = vadd.f32 %v306, %v292
  %v308 = vrot.slane %v307, 4
  %v309 = vadd.f32 %v307, %v308
  %v310 = vrot.slane %v309, 2
  %v311 = vadd.f32 %v309, %v310
  %v312 = vrot.slane %v311, 1
  %v313 = vadd.f32 %v311, %v312
  %314 = vst [vmem:[%s3] sm:$0xff] %v276
  %315 = vst [vmem:[%s4] sm:$0xff] %v313
  // Predicated region
  $region10: #{conv_block.2} parent=0 // pred_check
    _
  $region11: #{conv_block.2} parent=0 // pred_check_branch
    %317 = sbr.rel (0) target = $region13
  $region12: #{conv_block.2} parent=0 // pred_region
    _
  $region13: #{conv_block.2} parent=0 // pred_fallthru
    _
  // Predicated region
  $region14: #{conv_block.2} parent=0 // pred_check
    _
  $region15: #{conv_block.2} parent=0 // pred_check_branch
    %319 = sbr.rel (0) target = $region17
  $region16: #{conv_block.2} parent=0 // pred_region
    _
  $region17: #{conv_block.2} parent=0 // pred_fallthru
    _
  // Predicated region
  $region18: #{conv_block.2} parent=0 // pred_check
    _
  $region19: #{conv_block.2} parent=0 // pred_check_branch
    %321 = sbr.rel (0) target = $region21
  $region20: #{conv_block.2} parent=0 // pred_region
    _
  $region21: #{conv_block.2} parent=0 // pred_fallthru
    _
  // Predicated region
  $region22: #{conv_block.2} parent=0 // pred_check
    _
  $region23: #{conv_block.2} parent=0 // pred_check_branch
    %323 = sbr.rel (0) target = $region25
  $region24: #{conv_block.2} parent=0 // pred_region
    _
  $region25: #{conv_block.2} parent=0 // pred_fallthru
    _
  // Predicated region
  $region26: #{conv_block.2} parent=0 // pred_check
    _
  $region27: #{conv_block.2} parent=0 // pred_check_branch
    %325 = sbr.rel (0) target = $region29
  $region28: #{conv_block.2} parent=0 // pred_region
    _
  $region29: #{conv_block.2} parent=0 // pred_fallthru
    _
  // Predicated region
  $region30: #{conv_block.2} parent=0 // pred_check
    _
  $region31: #{conv_block.2} parent=0 // pred_check_branch
    %327 = sbr.rel (0) target = $region33
  $region32: #{conv_block.2} parent=0 // pred_region
    _
  $region33: #{conv_block.2} parent=0 // pred_fallthru
    _

</llo_original>
